<compile_context>
chip_gen: v5e
topology: v5e:2x2
jax: 0.10.0
libtpu: 0.0.40
codegen_flags: <defaults>
</compile_context>

<pallas_src>
import functools

import jax
import jax.numpy as jnp
import numpy as np
from jax import lax
from jax.experimental import pallas as pl
from jax.experimental.pallas import tpu as pltpu


def _round_up(x, m):
    return ((x + m - 1) // m) * m


def _mmd_tile_kernel(zj_ref, zi_ref, rowaux_ref, colaux_ref, out_ref, *,
                     n_kernels, pow2_ladder, n_tiles, ratios):
    """One (col-tile jc, row-tile ir) step of s^T K s (column-accumulated).

    zj_ref     : (tn, D) bf16/f32 VMEM -- scaled rows of Z for this column tile
    zi_ref     : (tm, D) bf16/f32 VMEM -- scaled rows of Z for this row tile
    rowaux_ref : (tm, 2) f32 VMEM      -- [a_i, s_i]   (a = -0.5||z_s||^2, s = signed weight)
    colaux_ref : (2, tn) f32 VMEM      -- [a_j ; s_j]
    out_ref    : (1, tn) f32 VMEM      -- lane-dense per-column partial of s^T K s,
                                          accumulated over the inner (row-tile) axis
    """
    jc = pl.program_id(0)          # outer, "parallel"  (column tile)
    ir = pl.program_id(1)          # inner, "arbitrary" (row tile / reduction)

    @pl.when(ir == 0)
    def _init():
        out_ref[...] = jnp.zeros_like(out_ref)

    # Circulant ownership: each unordered tile pair {ir, jc} is computed by
    # exactly one column tile, and every column owns ~T/2 tiles, so the
    # parallel axis stays load-balanced under megacore splitting.
    T = n_tiles
    diff = ir - jc
    d_off = jnp.where(diff < 0, diff + T, diff)        # (ir - jc) mod T, no int rem
    own = d_off <= (T - 1) // 2
    if T % 2 == 0:   # distance T/2 would be owned twice; give it to the low half
        own = jnp.logical_or(own, jnp.logical_and(d_off == T // 2, jc < T // 2))

    @pl.when(own)
    def _compute():
        # Gram tile on the MXU (bf16 operands, f32 accumulation).  The RBF base
        # scale is folded into z_s so:  arg = <zs_i,zs_j> + a_i + a_j
        #                                   = -||z_i - z_j||^2 / (bw * m_max).
        gram = lax.dot_general(
            zi_ref[...], zj_ref[...],
            dimension_numbers=(((1,), (1,)), ((), ())),
            preferred_element_type=jnp.float32)                    # (tm, tn)

        ra = rowaux_ref[...]
        ca = colaux_ref[...]
        a_i, s_i = ra[:, 0:1], ra[:, 1:2]                          # (tm, 1)
        a_j, s_j = ca[0:1, :], ca[1:2, :]                          # (1, tn)

        arg = jnp.minimum(gram + a_i + a_j, 0.0)                   # cdist(.,.)**2 >= 0

        if pow2_ladder:
            # mul_factor == 2: every term is an integer power of t = exp(arg);
            # one EUP exp + (n_kernels - 1) VPU squarings.
            t = jnp.exp(arg)
            ksum = t
            cur = t
            for _ in range(n_kernels - 1):
                cur = cur * cur
                ksum = ksum + cur
        else:
            # General multipliers: ratios are static Python floats baked in.
            ksum = jnp.exp(arg * ratios[0])
            for k in range(1, n_kernels):
                ksum = ksum + jnp.exp(arg * ratios[k])

        # Off-diagonal tile pairs are computed once but appear twice in s^T K s.
        w = jnp.where(ir == jc, 1.0, 2.0)
        col_part = jnp.sum(ksum * s_i, axis=0, keepdims=True)      # (1, tn)
        out_ref[...] += (w * col_part) * s_j


@functools.partial(jax.jit,
                   static_argnames=("n_kernels", "mul_factor", "use_bf16_gram"))
def mmd_loss(x, y, n_kernels=5, mul_factor=2.0, use_bf16_gram=True):
    """Pallas equivalent of MMDLoss(kernel=RBF()).forward(X, Y)."""
    n_x, d = x.shape
    n_y, d2 = y.shape
    assert d == d2, "feature dims must match"
    n = n_x + n_y

    z = jnp.concatenate([x.astype(jnp.float32), y.astype(jnp.float32)], axis=0)
    # Center Z: pairwise distances are translation invariant, and centering
    # removes the catastrophic cancellation in both the analytic bandwidth and
    # sq_i + sq_j - 2<z_i,z_j>; it also keeps the bf16 gram accurate.
    z = z - jnp.mean(z, axis=0, keepdims=True)

    # ---- pass 1: bandwidth heuristic (analytic, O(n*d)) == RBF.get_bandwidth ----
    # sum_{i,j} ||z_i - z_j||^2 = 2*n*sum_i ||z_i||^2 - 2*||sum_i z_i||^2
    sq = jnp.sum(z * z, axis=-1)
    sum_l2 = 2.0 * n * jnp.sum(sq) - 2.0 * jnp.sum(jnp.sum(z, axis=0) ** 2)
    bw = sum_l2 / float(n * n - n)

    mults = np.asarray(
        [float(mul_factor) ** (k - n_kernels // 2) for k in range(n_kernels)],
        dtype=np.float64)
    m_max = float(mults.max())
    ratios = tuple(float(r) for r in (m_max / mults))      # static, baked into kernel

    # ---- fold the base RBF scale into the matmul operands ----
    #   z_s = z * sqrt(2/(bw*m_max)),  a = -0.5*||z_s||^2
    #   =>  <zs_i, zs_j> + a_i + a_j = -||z_i - z_j||^2 / (bw*m_max)
    c = jnp.sqrt(2.0 / (bw * m_max))
    z_s = z * c
    if use_bf16_gram:
        z_mat = z_s.astype(jnp.bfloat16)      # MXU-native operands, f32 accumulation
        z_eff = z_mat.astype(jnp.float32)     # keep `a` consistent with rounded gram
    else:
        z_mat = z_s
        z_eff = z_s
    a = -0.5 * jnp.sum(z_eff * z_eff, axis=-1)                      # (n,)

    # Signed weights: s^T K s = mean(K_XX) - 2*mean(K_XY) + mean(K_YY).
    s = jnp.concatenate([jnp.full((n_x,), 1.0 / n_x, jnp.float32),
                         jnp.full((n_y,), -1.0 / n_y, jnp.float32)])

    # ---- pad & tile: pad only to the layout minimum, not to a full big tile ----
    if n <= 256:
        n_pad = max(_round_up(n, 8), 8)       # single full tile (grid (1,1))
        tile = n_pad
    else:
        n_pad = _round_up(n, 128)             # pad to 128, not the tile size
        # 256-tiles for large n (fewer steps, less Z re-streaming) but keep them
        # small enough for v7x's halved VMEM; 128-tiles otherwise so the
        # parallel axis has >=2 iterations (v7x megacore).
        tile = 256 if (n >= 1024 and n_pad % 256 == 0) else 128
    pad = n_pad - n
    if pad:
        z_mat = jnp.concatenate([z_mat, jnp.zeros((pad, d), z_mat.dtype)], axis=0)
        a = jnp.concatenate([a, jnp.zeros((pad,), jnp.float32)])
        s = jnp.concatenate([s, jnp.zeros((pad,), jnp.float32)])   # zero weight

    # Merge the four tiny aux vectors into two (fewer per-step DMAs).
    row_aux = jnp.stack([a, s], axis=1)       # (n_pad, 2): [a_i, s_i]
    col_aux = jnp.stack([a, s], axis=0)       # (2, n_pad): [a_j ; s_j]

    n_tiles = n_pad // tile
    kernel = functools.partial(
        _mmd_tile_kernel,
        n_kernels=n_kernels,
        pow2_ladder=(float(mul_factor) == 2.0),
        n_tiles=n_tiles,
        ratios=ratios)

    out = pl.pallas_call(
        kernel,
        out_shape=jax.ShapeDtypeStruct((1, n_pad), jnp.float32),
        grid_spec=pltpu.PrefetchScalarGridSpec(
            num_scalar_prefetch=0,
            grid=(n_tiles, n_tiles),          # (col tile jc [parallel], row tile ir)
            in_specs=[
                pl.BlockSpec((tile, d), lambda jc, ir: (jc, 0)),   # zj: changes with jc only
                pl.BlockSpec((tile, d), lambda jc, ir: (ir, 0)),   # zi: streamed per inner step
                pl.BlockSpec((tile, 2), lambda jc, ir: (ir, 0)),   # [a_i, s_i]
                pl.BlockSpec((2, tile), lambda jc, ir: (0, jc)),   # [a_j ; s_j]
            ],
            out_specs=pl.BlockSpec((1, tile), lambda jc, ir: (0, jc)),
        ),
        compiler_params=pltpu.CompilerParams(
            dimension_semantics=("parallel", "arbitrary")),
    )(z_mat, z_mat, row_aux, col_aux)

    # Final O(n) reduction of the lane-dense per-column partials.
    return jnp.sum(out)


def _mmd_reference(x, y, n_kernels=5, mul_factor=2.0):
    """Pure-JAX reference mirroring the PyTorch module (explicit differences)."""
    z = jnp.concatenate([x, y], axis=0).astype(jnp.float32)
    n = z.shape[0]
    n_x = x.shape[0]
    diff = z[:, None, :] - z[None, :, :]
    l2 = jnp.sum(diff * diff, axis=-1)
    bw = jnp.sum(l2) / (n * n - n)
    mults = mul_factor ** (jnp.arange(n_kernels) - n_kernels // 2)
    k = jnp.exp(-l2[None, ...] / (bw * mults)[:, None, None]).sum(axis=0)
    xx = jnp.mean(k[:n_x, :n_x])
    xy = jnp.mean(k[:n_x, n_x:])
    yy = jnp.mean(k[n_x:, n_x:])
    return xx - 2.0 * xy + yy


# TODO(synk): only the default RBF path (bandwidth=None, sum heuristic) is
# implemented; the median_heuristic / fixed-bandwidth branches and the unused
# max_batch_size argument of MMDLoss.forward are not translated.

if __name__ == "__main__":
    key = jax.random.PRNGKey(0)
    kx, ky, kx2, ky2, kx3, ky3 = jax.random.split(key, 6)
    D = 32

    # Test 1: small equal batches (single-tile path).
    X = jax.random.normal(kx, (8, D), dtype=jnp.float32)
    Y = jax.random.normal(ky, (8, D), dtype=jnp.float32) + 0.5
    ref = jax.block_until_ready(_mmd_reference(X, Y))

    res_bf16 = jax.block_until_ready(mmd_loss(X, Y))
    np.testing.assert_allclose(np.asarray(res_bf16), np.asarray(ref),
                               rtol=5e-3, atol=1e-3)      # bf16 gram operands

    res_f32 = jax.block_until_ready(mmd_loss(X, Y, use_bf16_gram=False))
    np.testing.assert_allclose(np.asarray(res_f32), np.asarray(ref),
                               rtol=5e-4, atol=5e-5)      # f32 path: tight check

    # Test 2: unequal, non-multiple-of-8 batches (padding / zero-weight path).
    X2 = jax.random.normal(kx2, (7, D), dtype=jnp.float32)
    Y2 = jax.random.normal(ky2, (6, D), dtype=jnp.float32) + 0.5
    res2 = jax.block_until_ready(mmd_loss(X2, Y2))
    ref2 = jax.block_until_ready(_mmd_reference(X2, Y2))
    np.testing.assert_allclose(np.asarray(res2), np.asarray(ref2),
                               rtol=5e-3, atol=1e-3)

    # Test 3: multi-tile path (n=320 -> 3x3 grid of 128-tiles; exercises the
    # symmetry/ownership logic, accumulation over the inner axis and padding).
    X3 = jax.random.normal(kx3, (150, D), dtype=jnp.float32)
    Y3 = jax.random.normal(ky3, (170, D), dtype=jnp.float32) + 0.5
    res3 = jax.block_until_ready(mmd_loss(X3, Y3))
    ref3 = jax.block_until_ready(_mmd_reference(X3, Y3))
    np.testing.assert_allclose(np.asarray(res3), np.asarray(ref3),
                               rtol=5e-3, atol=1e-3)

    print("KERNEL_OK")
</pallas_src>

<mosaic_0001>
module attributes {stable_mosaic.version = 11 : i64} {
  func.func @_mmd_tile_kernel(%arg0: i32, %arg1: i32, %arg2: memref<16x32xbf16, #tpu.memory_space<vmem>>, %arg3: memref<16x32xbf16, #tpu.memory_space<vmem>>, %arg4: memref<16x2xf32, #tpu.memory_space<vmem>>, %arg5: memref<2x16xf32, #tpu.memory_space<vmem>>, %arg6: memref<1x16xf32, #tpu.memory_space<vmem>>) attributes {dimension_semantics = [#tpu.dimension_semantics<parallel>, #tpu.dimension_semantics<arbitrary>], iteration_bounds = array<i64: 1, 1>, scalar_prefetch = 0 : i64, scratch_operands = 0 : i64, tpu.core_type = #tpu.core_type<tc>, window_params = [{transform_indices = @transform_0, window_bounds = array<i64: 16, 32>}, {transform_indices = @transform_1, window_bounds = array<i64: 16, 32>}, {transform_indices = @transform_2, window_bounds = array<i64: 16, 2>}, {transform_indices = @transform_3, window_bounds = array<i64: 2, 16>}, {transform_indices = @transform_4, window_bounds = array<i64: 1, 16>}]} {
    %c0_i32 = arith.constant 0 : i32
    %0 = arith.cmpi eq, %arg1, %c0_i32 : i32
    %1 = arith.extui %0 : i1 to i32
    %c0_i32_0 = arith.constant 0 : i32
    %2 = arith.cmpi ne, %1, %c0_i32_0 : i32
    scf.if %2 {
      %cst = arith.constant 0.000000e+00 : f32
      %10 = vector.broadcast %cst : f32 to vector<1x16xf32>
      %c0 = arith.constant 0 : index
      %c0_4 = arith.constant 0 : index
      %11 = vector.load %arg6[%c0, %c0_4] : memref<1x16xf32, #tpu.memory_space<vmem>>, vector<1x16xf32>
      tpu.vector_store %arg6[%c0, %c0_4], %10 {strides = array<i32>} : memref<1x16xf32, #tpu.memory_space<vmem>>, vector<1x16xf32>,
    } else {
    }
    %3 = arith.subi %arg1, %arg0 : i32
    %c0_i32_1 = arith.constant 0 : i32
    %4 = arith.cmpi slt, %3, %c0_i32_1 : i32
    %c1_i32 = arith.constant 1 : i32
    %5 = arith.addi %3, %c1_i32 : i32
    %6 = arith.select %4, %5, %3 : i32
    %c0_i32_2 = arith.constant 0 : i32
    %7 = arith.cmpi sle, %6, %c0_i32_2 : i32
    %8 = arith.extui %7 : i1 to i32
    %c0_i32_3 = arith.constant 0 : i32
    %9 = arith.cmpi ne, %8, %c0_i32_3 : i32
    scf.if %9 {
      %c0 = arith.constant 0 : index
      %c0_4 = arith.constant 0 : index
      %10 = vector.load %arg3[%c0, %c0_4] : memref<16x32xbf16, #tpu.memory_space<vmem>>, vector<16x32xbf16>
      %c0_5 = arith.constant 0 : index
      %c0_6 = arith.constant 0 : index
      %11 = vector.load %arg2[%c0_5, %c0_6] : memref<16x32xbf16, #tpu.memory_space<vmem>>, vector<16x32xbf16>
      %cst = arith.constant dense<0.000000e+00> : vector<16x16xf32>
      %12 = tpu.matmul %10, %11, %cst {dimension_numbers = #tpu.dot_dimension_numbers<[1], [1], [0], [0], [0, 0, 1, 0], [], []>} : vector<16x32xbf16>, vector<16x32xbf16>, vector<16x16xf32> -> vector<16x16xf32>
      %c0_7 = arith.constant 0 : index
      %c0_8 = arith.constant 0 : index
      %13 = vector.load %arg4[%c0_7, %c0_8] : memref<16x2xf32, #tpu.memory_space<vmem>>, vector<16x2xf32>
      %c0_9 = arith.constant 0 : index
      %c0_10 = arith.constant 0 : index
      %14 = vector.load %arg5[%c0_9, %c0_10] : memref<2x16xf32, #tpu.memory_space<vmem>>, vector<2x16xf32>
      %15 = vector.extract_strided_slice %13 {offsets = [0, 0], sizes = [16, 1], strides = [1, 1]} : vector<16x2xf32> to vector<16x1xf32>
      %16 = vector.extract_strided_slice %13 {offsets = [0, 1], sizes = [16, 1], strides = [1, 1]} : vector<16x2xf32> to vector<16x1xf32>
      %17 = vector.extract_strided_slice %14 {offsets = [0, 0], sizes = [1, 16], strides = [1, 1]} : vector<2x16xf32> to vector<1x16xf32>
      %18 = vector.extract_strided_slice %14 {offsets = [1, 0], sizes = [1, 16], strides = [1, 1]} : vector<2x16xf32> to vector<1x16xf32>
      %19 = vector.broadcast %15 : vector<16x1xf32> to vector<16x16xf32>
      %20 = arith.addf %12, %19 : vector<16x16xf32>
      %21 = vector.broadcast %17 : vector<1x16xf32> to vector<16x16xf32>
      %22 = arith.addf %20, %21 : vector<16x16xf32>
      %cst_11 = arith.constant 0.000000e+00 : f32
      %23 = vector.broadcast %cst_11 : f32 to vector<16x16xf32>
      %24 = arith.minimumf %22, %23 : vector<16x16xf32>
      %25 = math.exp %24 : vector<16x16xf32>
      %26 = arith.mulf %25, %25 : vector<16x16xf32>
      %27 = arith.addf %25, %26 : vector<16x16xf32>
      %28 = arith.mulf %26, %26 : vector<16x16xf32>
      %29 = arith.addf %27, %28 : vector<16x16xf32>
      %30 = arith.mulf %28, %28 : vector<16x16xf32>
      %31 = arith.addf %29, %30 : vector<16x16xf32>
      %32 = arith.mulf %30, %30 : vector<16x16xf32>
      %33 = arith.addf %31, %32 : vector<16x16xf32>
      %34 = arith.cmpi eq, %arg1, %arg0 : i32
      %cst_12 = arith.constant 1.000000e+00 : f32
      %cst_13 = arith.constant 2.000000e+00 : f32
      %35 = arith.select %34, %cst_12, %cst_13 : f32
      %36 = vector.broadcast %16 : vector<16x1xf32> to vector<16x16xf32>
      %37 = arith.mulf %33, %36 : vector<16x16xf32>
      %cst_14 = arith.constant dense<0.000000e+00> : vector<16xf32>
      %38 = vector.multi_reduction <add>, %37, %cst_14 [0] : vector<16x16xf32> to vector<16xf32>
      %39 = vector.shape_cast %38 : vector<16xf32> to vector<1x16xf32>
      %c0_15 = arith.constant 0 : index
      %c0_16 = arith.constant 0 : index
      %40 = vector.load %arg6[%c0_15, %c0_16] : memref<1x16xf32, #tpu.memory_space<vmem>>, vector<1x16xf32>
      %41 = vector.broadcast %35 : f32 to vector<1x16xf32>
      %42 = arith.mulf %41, %39 : vector<1x16xf32>
      %43 = arith.mulf %42, %18 : vector<1x16xf32>
      %44 = arith.addf %40, %43 : vector<1x16xf32>
      %c0_17 = arith.constant 0 : index
      %c0_18 = arith.constant 0 : index
      %45 = vector.load %arg6[%c0_17, %c0_18] : memref<1x16xf32, #tpu.memory_space<vmem>>, vector<1x16xf32>
      tpu.vector_store %arg6[%c0_17, %c0_18], %44 {strides = array<i32>} : memref<1x16xf32, #tpu.memory_space<vmem>>, vector<1x16xf32>,
    } else {
    }
    return
  }
  func.func @transform_0(%arg0: i32, %arg1: i32) -> (i32, i32) {
    %c0_i32 = arith.constant 0 : i32
    %c0_i32_0 = arith.constant 0 : i32
    return %arg0, %c0_i32 : i32, i32
  }
  func.func @transform_1(%arg0: i32, %arg1: i32) -> (i32, i32) {
    %c0_i32 = arith.constant 0 : i32
    %c0_i32_0 = arith.constant 0 : i32
    return %arg1, %c0_i32 : i32, i32
  }
  func.func @transform_2(%arg0: i32, %arg1: i32) -> (i32, i32) {
    %c0_i32 = arith.constant 0 : i32
    %c0_i32_0 = arith.constant 0 : i32
    return %arg1, %c0_i32 : i32, i32
  }
  func.func @transform_3(%arg0: i32, %arg1: i32) -> (i32, i32) {
    %c0_i32 = arith.constant 0 : i32
    %c0_i32_0 = arith.constant 0 : i32
    return %c0_i32, %arg0 : i32, i32
  }
  func.func @transform_4(%arg0: i32, %arg1: i32) -> (i32, i32) {
    %c0_i32 = arith.constant 0 : i32
    %c0_i32_0 = arith.constant 0 : i32
    return %c0_i32, %arg0 : i32, i32
  }
}

</mosaic_0001>

<llo_original>
// kernel: mmd_loss.1
$region0: #{mmd_loss.1}
  #allocation0 [shape = 'u32[]', space=smem, size = 0x4, offset = 0x4, fixed_abs, tag = 'smem constant byte address 0x4 - core index']
  #allocation1 [shape = 'u32[72,128]{1,0:T(1,128)}', space=vmem, size = 0x9000, scoped, tag = 'internal scratch']
  %s0 = inlined_call_operand.vmem [shape: bf16[16,32], index: 0, kind: input, shape index: {}, may-alias: {0,1}]
  %s1 = inlined_call_operand.vmem [shape: bf16[16,32], index: 1, kind: input, shape index: {}, may-alias: {0,1}]
  %s2 = inlined_call_operand.vmem [shape: f32[16,2], index: 2, kind: input, shape index: {}]
  %s3 = inlined_call_operand.vmem [shape: f32[2,16], index: 3, kind: input, shape index: {}]
  %s4 = inlined_call_operand.vmem [shape: f32[1,16], index: 4, kind: output, shape index: {}]
  %s5 = sld [smem:[#allocation0]]
  $region34: #{mmd_loss.1} parent=0
    _
  %s7 = ssub.s32 1, %s5
  %s8 = scalar_select 0, %s7, %s5
  // Predicated region
  $region2: #{mmd_loss.1} parent=0 // pred_check
    _
  $region3: #{mmd_loss.1} parent=0 // pred_check_branch
    %10 = sbr.rel (0) target = $region5
  $region4: #{mmd_loss.1} parent=0 // pred_region
    _
  $region5: #{mmd_loss.1} parent=0 // pred_fallthru
    _
  // Predicated region
  $region6: #{mmd_loss.1} parent=0 // pred_check
    _
  $region7: #{mmd_loss.1} parent=0 // pred_check_branch
    %12 = sbr.rel (0) target = $region9
  $region8: #{mmd_loss.1} parent=0 // pred_region
    _
  $region9: #{mmd_loss.1} parent=0 // pred_fallthru
    _
  // Predicated region
  $region10: #{mmd_loss.1} parent=0 // pred_check
    _
  $region11: #{mmd_loss.1} parent=0 // pred_check_branch
    %14 = sbr.rel (0) target = $region13
  $region12: #{mmd_loss.1} parent=0 // pred_region
    _
  $region13: #{mmd_loss.1} parent=0 // pred_fallthru
    _
  // Predicated region
  $region14: #{mmd_loss.1} parent=0 // pred_check
    _
  $region15: #{mmd_loss.1} parent=0 // pred_check_branch
    %16 = sbr.rel (0) target = $region17
  $region16: #{mmd_loss.1} parent=0 // pred_region
    _
  $region17: #{mmd_loss.1} parent=0 // pred_fallthru
    _
  %p18 = scmp.eq.s32.totalorder 0, 0
  // Predicated region
  $region18: #{mmd_loss.1} parent=0 // pred_check
    %p19 = pneg %p18
  $region19: #{mmd_loss.1} parent=0 // pred_check_branch
    %21 = sbr.rel (%p19) target = $region21
  $region20: #{mmd_loss.1} parent=0 // pred_region
    %vm22 = vcmask 122880
    %23 = vst.msk [vmem:[%s4] sm:$0x1] %vm22, 0.0
  $region21: #{mmd_loss.1} parent=0 // pred_fallthru
    _
  %s24 = ssub.s32 0, 0
  %p25 = scmp.lt.s32.totalorder %s24, 0
  %s26 = sadd.s32 %s24, 1
  %s27 = scalar_select %p25, %s26, %s24
  %p28 = scmp.le.s32.totalorder %s27, 0
  // Predicated region
  $region22: #{mmd_loss.1} parent=0 // pred_check
    %p29 = pneg %p28
  $region23: #{mmd_loss.1} parent=0 // pred_check_branch
    %31 = sbr.rel (%p29) target = $region25
  $region24: #{mmd_loss.1} parent=0 // pred_region
    %v32 = vld [vmem:[%s1] sm:$0xf]
    %v33 = vld [vmem:[%s1 + $0x4] sm:$0xf]
    %v34 = vld [vmem:[%s0] sm:$0xf]
    %v35 = vld [vmem:[%s0 + $0x4] sm:$0xf]
    %v36 = vld [vmem:[%s2] sm:$0xff]
    %v37 = vld [vmem:[%s2 + $0x8] sm:$0xff]
    %v38 = vld [vmem:[%s3] sm:$0x3]
    %40 = vset.pattern.permute.xlu0 0
    %41 = vperm.xlu0 %40, %v36
    %v42 = vpop.permute.xlu0 %41
    %45 = vset.pattern.permute.xlu0 0
    %46 = vperm.xlu0 %45, %v37
    %v47 = vpop.permute.xlu0 %46
    %v51 = vunpack.c.l.b16 %v32
    %v52 = vunpack.c.l.b16 %v33
    %v53 = vpack.c.b16 %v52, %v51
    %v56 = vunpack.c.l.b16 %v34
    %v57 = vunpack.c.l.b16 %v35
    %v58 = vpack.c.b16 %v57, %v56
    %vm59 = vcmask 261120
    %v61 = vsel %vm59, %v53, 0
    %v64 = vsel %vm59, %v58, 0
    %66 = vmatpush.bf16.xpose.msra.mxu0 0
    %67 = vmatpush.bf16.xpose.msra.mxu0 0
    %68 = vmatpush.bf16.xpose.msra.mxu0 0
    %69 = vmatpush.bf16.xpose.msra.mxu0 0
    %70 = vmatpush.bf16.xpose.msra.mxu0 0
    %71 = vmatpush.bf16.xpose.msra.mxu0 0
    %72 = vmatpush.bf16.xpose.msra.mxu0 0
    %73 = vmatpush.bf16.xpose.msra.mxu0 %v64
    %74 = vmatmul.bf16.gmra.mxu0 %v61
    %v75 = vpop.f32.mrf.mxu0
    %v76 = vadd.f32 %v42, %v75
    %v77 = vpop.f32.mrf.mxu0
    %v78 = vadd.f32 %v47, %v77
    %79 = vdwg.mxu0
    %v80 = vperm.slane %v38, 0
    %v81 = vadd.f32 %v76, %v80
    %v82 = vadd.f32 %v78, %v80
    %v83 = vmin.f32 %v81, 0.0
    %v84 = vmin.f32 %v82, 0.0
    %v85 = vmul.f32 %v83, 1.442695
    %v86 = vpow.pop %v85
    %v87 = vmul.f32 %v84, 1.442695
    %v88 = vpow.pop %v87
    %v89 = vmul.f32 %v86, %v86
    %v90 = vmul.f32 %v88, %v88
    %v91 = vadd.f32 %v86, %v89
    %v92 = vadd.f32 %v88, %v90
    %v93 = vmul.f32 %v89, %v89
    %v94 = vmul.f32 %v90, %v90
    %v95 = vadd.f32 %v91, %v93
    %v96 = vadd.f32 %v92, %v94
    %v97 = vmul.f32 %v93, %v93
    %v98 = vmul.f32 %v94, %v94
    %v99 = vadd.f32 %v95, %v97
    %v100 = vadd.f32 %v96, %v98
    %v101 = vmul.f32 %v97, %v97
    %v102 = vmul.f32 %v98, %v98
    %v103 = vadd.f32 %v99, %v101
    %v104 = vadd.f32 %v100, %v102
    %p105 = scmp.eq.s32.totalorder 0, 0
    %s106 = scalar_select %p105, 1.0, 2.0
    %107 = vset.pattern.permute.xlu0 1
    %108 = vperm.xlu0 %107, %v36
    %v109 = vpop.permute.xlu0 %108
    %111 = vset.pattern.permute.xlu0 1
    %112 = vperm.xlu0 %111, %v37
    %v113 = vpop.permute.xlu0 %112
    %v115 = vmul.f32 %v103, %v109
    %v116 = vmul.f32 %v104, %v113
    %vm117 = vcmask 130048
    %v118 = vsel %vm117, %v115, 0.0
    %v119 = vsel %vm117, %v116, 0.0
    %v120 = vadd.f32 %v118, %v119
    %v121 = vrot.slane %v120, 4
    %v122 = vadd.f32 %v120, %v121
    %v123 = vrot.slane %v122, 2
    %v124 = vadd.f32 %v122, %v123
    %v125 = vrot.slane %v124, 1
    %v126 = vadd.f32 %v124, %v125
    %v127 = vld [vmem:[%s4] sm:$0x1]
    %v128 = vstv %s106
    %v129 = vmul.f32 %v128, %v126
    %v130 = vmul.f32 %v129, %v38
    %132 = vst [vmem:[#allocation1] sm:$0xff] %v130
    %s133 = scalar_lea.vmem [#allocation1], 1
    %v134 = vld [vmem:[%s133] ss:$9 sm:$0xff]
    %v136 = vadd.f32 %v127, %v134
    %vm137 = vcmask 122880
    %138 = vst.msk [vmem:[%s4] sm:$0x1] %vm137, %v136
  $region25: #{mmd_loss.1} parent=0 // pred_fallthru
    _
  // Predicated region
  $region26: #{mmd_loss.1} parent=0 // pred_check
    _
  $region27: #{mmd_loss.1} parent=0 // pred_check_branch
    %140 = sbr.rel (0) target = $region29
  $region28: #{mmd_loss.1} parent=0 // pred_region
    _
  $region29: #{mmd_loss.1} parent=0 // pred_fallthru
    _
  // Predicated region
  $region30: #{mmd_loss.1} parent=0 // pred_check
    _
  $region31: #{mmd_loss.1} parent=0 // pred_check_branch
    %142 = sbr.rel (0) target = $region33
  $region32: #{mmd_loss.1} parent=0 // pred_region
    _
  $region33: #{mmd_loss.1} parent=0 // pred_fallthru
    _

</llo_original>
